<compile_context>
chip_gen: v7x
topology: tpu7x:2x2x1
jax: 0.10.0
libtpu: 0.0.40
codegen_flags: <defaults>
</compile_context>

<pallas_src>
import functools

import jax
import jax.numpy as jnp
import numpy as np
from jax.experimental import pallas as pl
from jax.experimental.pallas import tpu as pltpu


def sequence_mask(lengths, max_len):
    """JAX port of the torch helper: (B, max_len) float32 mask."""
    seq_range = jnp.arange(max_len, dtype=lengths.dtype)
    return (seq_range[None, :] < lengths[:, None]).astype(jnp.float32)


def _per_lane_ce(x_f32, tgt):
    """Per-timestep cross entropy.  x_f32: (1, C, TILE_T) f32, tgt: (1, 1, TILE_T) int32.
    Classes live on sublanes, timesteps on the 128-lane axis.  Computed in the max-shifted
    domain:  CE = lse(x - max) - (x - max)[tgt]  (reuses the x - max vregs)."""
    col_max = jnp.max(x_f32, axis=1, keepdims=True)                     # XLU sublane reduce
    shifted = x_f32 - col_max
    lse_shift = jnp.log(jnp.sum(jnp.exp(shifted), axis=1, keepdims=True))
    cls = jax.lax.broadcasted_iota(jnp.int32, x_f32.shape, 1)
    picked = jnp.sum(jnp.where(cls == tgt, shifted, 0.0), axis=1, keepdims=True)
    return lse_shift - picked                                           # (1, 1, TILE_T)


def _ce_lengths_kernel(lens_ref, logits_ref, target_ref, lsum_ref, *,
                       tile_t, split_shift, split_own, t_total, trail):
    """grid = (B, NSPLIT, tiles_per_split).  Output block is indexed by (batch, split) only,
    so it stays resident in VMEM across the 'arbitrary' time axis as a vector accumulator.
    The sequence mask comes from lengths in SMEM — no mask bytes ever cross HBM."""
    b = pl.program_id(0)
    s = pl.program_id(1)
    t = pl.program_id(2)

    @pl.when(t == 0)
    def _():
        lsum_ref[...] = jnp.zeros_like(lsum_ref)

    loss = _per_lane_ce(logits_ref[...].astype(jnp.float32), target_ref[...])

    # Validity predicate:
    #   * folds the sequence mask (pos < lengths[b] * trail),
    #   * kills undefined lanes of the ragged last tile (pos < t_total),
    #   * de-duplicates the overlapping tile when the 2-way split doesn't divide evenly
    #     (ownership: split s only counts pos >= s * split_own).
    t0 = (s * split_shift + t) * tile_t
    lane = jax.lax.broadcasted_iota(jnp.int32, (1, 1, tile_t), 2)
    pos = t0 + lane
    limit = jnp.minimum(lens_ref[b] * trail, t_total)
    valid = (pos >= s * split_own) & (pos < limit)
    lsum_ref[...] += jnp.where(valid, loss, 0.0)      # select, not multiply: garbage-safe


def _ce_mask_kernel(logits_ref, target_ref, mask_ref, lsum_ref, *,
                    tile_t, split_shift, split_own, t_total):
    """Fallback path when an arbitrary mask tensor is supplied instead of lengths."""
    s = pl.program_id(1)
    t = pl.program_id(2)

    @pl.when(t == 0)
    def _():
        lsum_ref[...] = jnp.zeros_like(lsum_ref)

    loss = _per_lane_ce(logits_ref[...].astype(jnp.float32), target_ref[...])
    m = mask_ref[...].astype(jnp.float32)

    t0 = (s * split_shift + t) * tile_t
    lane = jax.lax.broadcasted_iota(jnp.int32, (1, 1, tile_t), 2)
    pos = t0 + lane
    valid = (pos >= s * split_own) & (pos < t_total)
    lsum_ref[...] += jnp.where(valid, loss * m, 0.0)


def _choose_tile_t(t_total, n_classes, itemsize, has_mask_stream):
    """Lane (timestep) tile sized so the per-step working set — double-buffered logits in
    their storage dtype, ~3 f32 class-axis temporaries, targets (+ optional mask stream)
    and the resident accumulator — stays under ~10 MiB.  That fits v5e's 16 MiB *default
    scoped* VMEM (the tightest default across generations) and sits far below v7x's 64 MiB
    physical VMEM, while allowing up to 16K-lane tiles for small class counts so the
    ~0.35 us per-grid-step overhead stops mattering for long T.  For t_total > 128 we aim
    for >= 2 time tiles so the second 'parallel' grid axis can feed both v7x TensorCores."""
    if t_total <= 128:
        return t_total                                  # single exact full-T block
    per_col = (2 * n_classes * itemsize                 # logits, double buffered
               + 3 * n_classes * 4                      # f32 x / shifted / exp temporaries
               + 2 * 4                                  # int32 targets, double buffered
               + (2 * 4 if has_mask_stream else 0)      # optional f32 mask stream
               + 3 * 4)                                 # accumulator + slack
    budget = 10 * 1024 * 1024
    tile = (budget // per_col) // 128 * 128
    tile = max(128, min(tile, 16 * 1024))
    half = -(-(-(-t_total // 2)) // 128) * 128          # round_up(ceil(t_total/2), 128)
    return int(min(tile, max(half, 128)))               # always a 128-multiple <= t_total


def masked_cross_entropy_loss(inp, target, lengths=None, mask=None, max_len=None,
                              *, _tile_t=None):
    """inp: (B, C, T, ...) float logits (f32 or bf16), class dim = 1.
    target: (B, T, ...) int class indices.  lengths: (B,) ints, or mask broadcastable to
    target.  Returns the masked mean CE (scalar f32), matching the torch module.
    max_len is accepted for API parity; for shape-consistent inputs it always equals T."""
    if lengths is None and mask is None:
        raise RuntimeError("Should provide either lengths or mask")

    B, C = inp.shape[0], inp.shape[1]
    t_dims = target.shape[1:]
    T = int(t_dims[0]) if len(t_dims) else 1
    trail = int(np.prod(t_dims[1:])) if len(t_dims) > 1 else 1
    t_total = T * trail

    # Free reshapes only — logits keep channel-first layout and storage dtype
    # (bf16 stays bf16 through the DMA; f32 cast is on-chip).
    logits3d = inp.reshape(B, C, t_total)
    target3d = target.reshape(B, 1, t_total).astype(jnp.int32)

    use_lengths = mask is None
    itemsize = jnp.dtype(logits3d.dtype).itemsize
    tile_t = _tile_t if _tile_t is not None else _choose_tile_t(
        t_total, C, itemsize, has_mask_stream=not use_lengths)

    n_tb = -(-t_total // tile_t)                 # number of timestep tiles
    nsplit = 2 if n_tb >= 2 else 1               # 2nd parallel axis for v7x's two TCs
    tps = -(-n_tb // nsplit)                     # tiles per split
    grid = (B, nsplit, tps)
    split_shift = n_tb - tps                     # split s processes tiles [s*shift, s*shift+tps)
    split_own = tps * tile_t                     # split s owns positions >= s*split_own

    # Parallel over batch and split (megacore), arbitrary over time (accumulator axis).
    # Only raise the scoped-VMEM limit if a huge class count forces the 128-lane tile floor
    # past the defaults; cap the request safely below v7x's 64 MiB physical VMEM.
    per_col = 2 * C * itemsize + 3 * C * 4 + 4 * 4 + 3 * 4
    est = per_col * tile_t
    ckw = dict(dimension_semantics=("parallel", "parallel", "arbitrary"))
    if est > 12 * 1024 * 1024:
        # TODO(synk): vocab-scale C needs a class-tiled online-logsumexp variant.
        ckw["vmem_limit_bytes"] = int(min(est + 8 * 1024 * 1024, 56 * 1024 * 1024))
    cparams = pltpu.CompilerParams(**ckw)

    out_shape = jax.ShapeDtypeStruct((B * nsplit, 1, tile_t), jnp.float32)

    if use_lengths:
        lengths_i32 = jnp.asarray(lengths).astype(jnp.int32)
        kernel = functools.partial(_ce_lengths_kernel, tile_t=tile_t,
                                   split_shift=split_shift, split_own=split_own,
                                   t_total=t_total, trail=trail)
        lsum = pl.pallas_call(
            kernel,
            out_shape=out_shape,
            grid_spec=pltpu.PrefetchScalarGridSpec(
                num_scalar_prefetch=1,            # lengths -> SMEM; mask never touches HBM
                grid=grid,
                in_specs=[
                    pl.BlockSpec((1, C, tile_t),
                                 lambda b, s, t, lens: (b, 0, s * split_shift + t)),
                    pl.BlockSpec((1, 1, tile_t),
                                 lambda b, s, t, lens: (b, 0, s * split_shift + t)),
                ],
                out_specs=pl.BlockSpec((1, 1, tile_t),
                                       lambda b, s, t, lens: (b * nsplit + s, 0, 0)),
            ),
            compiler_params=cparams,
        )(lengths_i32, logits3d, target3d)
        # Denominator = sum(mask) is known analytically from lengths — no msum pass needed.
        denom = jnp.sum(jnp.minimum(lengths_i32, T).astype(jnp.float32)) * float(trail)
    else:
        mask_ = jnp.broadcast_to(mask, target.shape).astype(jnp.float32)   # expand_as(target)
        mask3d = mask_.reshape(B, 1, t_total)
        kernel = functools.partial(_ce_mask_kernel, tile_t=tile_t,
                                   split_shift=split_shift, split_own=split_own,
                                   t_total=t_total)
        lsum = pl.pallas_call(
            kernel,
            out_shape=out_shape,
            grid_spec=pltpu.PrefetchScalarGridSpec(
                num_scalar_prefetch=0,
                grid=grid,
                in_specs=[
                    pl.BlockSpec((1, C, tile_t), lambda b, s, t: (b, 0, s * split_shift + t)),
                    pl.BlockSpec((1, 1, tile_t), lambda b, s, t: (b, 0, s * split_shift + t)),
                    pl.BlockSpec((1, 1, tile_t), lambda b, s, t: (b, 0, s * split_shift + t)),
                ],
                out_specs=pl.BlockSpec((1, 1, tile_t),
                                       lambda b, s, t: (b * nsplit + s, 0, 0)),
            ),
            compiler_params=cparams,
        )(logits3d, target3d, mask3d)
        denom = jnp.sum(mask_)

    # Tiny final reduction; NaN when the mask sums to zero (matches torch semantics).
    return jnp.sum(lsum) / denom


def _reference(inp, target, lengths=None, mask=None, max_len=None):
    if mask is None:
        mask = sequence_mask(lengths, max_len)[..., None]
    mask_ = jnp.broadcast_to(mask, target.shape).astype(jnp.float32)
    C = inp.shape[1]
    perm = (0,) + tuple(range(2, inp.ndim)) + (1,)
    logits2d = jnp.transpose(inp, perm).reshape(-1, C).astype(jnp.float32)
    target1d = target.reshape(-1)
    logp = jax.nn.log_softmax(logits2d, axis=-1)
    losses = -jnp.take_along_axis(logp, target1d[:, None], axis=-1)[:, 0]
    m = mask_.reshape(-1)
    return jnp.sum(losses * m) / jnp.sum(m)


if __name__ == "__main__":
    key = jax.random.PRNGKey(0)
    k1, k2, k3, k4, k5, k6 = jax.random.split(key, 6)

    # Test 1: small f32 case — B=2, C=16 classes, T=8 timesteps (single full-T tile).
    B, C, T = 2, 16, 8
    inp = jax.random.normal(k1, (B, C, T, 1), dtype=jnp.float32)
    target = jax.random.randint(k2, (B, T, 1), 0, C, dtype=jnp.int32)
    lengths = jnp.array([8, 5], dtype=jnp.int32)
    loss = jax.block_until_ready(
        masked_cross_entropy_loss(inp, target, lengths=lengths, max_len=T))
    ref = _reference(inp, target, lengths=lengths, max_len=T)
    assert np.allclose(np.asarray(loss), np.asarray(ref), rtol=1e-4, atol=1e-5), (loss, ref)

    # Test 2: bf16 logits, long ragged T (700 -> two 384-lane tiles, last one partial):
    # exercises the bf16 HBM path, in-kernel sequence mask, the 2-way split and the
    # ragged-tail gating — with no wrapper padding anywhere.
    B2, C2, T2 = 3, 64, 700
    inp2 = jax.random.normal(k3, (B2, C2, T2, 1), dtype=jnp.bfloat16)
    target2 = jax.random.randint(k4, (B2, T2, 1), 0, C2, dtype=jnp.int32)
    lengths2 = jnp.array([700, 431, 65], dtype=jnp.int32)
    loss2 = jax.block_until_ready(
        masked_cross_entropy_loss(inp2, target2, lengths=lengths2, max_len=T2))
    ref2 = _reference(inp2, target2, lengths=lengths2, max_len=T2)
    assert np.allclose(np.asarray(loss2), np.asarray(ref2), rtol=1e-4, atol=1e-4), (loss2, ref2)

    # Test 3: forced 128-lane tile so T=300 has 3 tiles -> odd tile count across the 2-way
    # split (overlapping tile de-duplicated by the ownership gate) plus a ragged last tile.
    B3, C3, T3 = 2, 8, 300
    inp3 = jax.random.normal(k5, (B3, C3, T3, 1), dtype=jnp.float32)
    target3 = jax.random.randint(k6, (B3, T3, 1), 0, C3, dtype=jnp.int32)
    lengths3 = jnp.array([300, 137], dtype=jnp.int32)
    loss3 = jax.block_until_ready(
        masked_cross_entropy_loss(inp3, target3, lengths=lengths3, max_len=T3, _tile_t=128))
    ref3 = _reference(inp3, target3, lengths=lengths3, max_len=T3)
    assert np.allclose(np.asarray(loss3), np.asarray(ref3), rtol=1e-4, atol=1e-5), (loss3, ref3)

    # Test 4: explicit-mask path (arbitrary mask streamed from HBM) on the same tiling.
    mask3 = sequence_mask(lengths3, T3)[..., None]
    loss4 = jax.block_until_ready(
        masked_cross_entropy_loss(inp3, target3, mask=mask3, _tile_t=128))
    assert np.allclose(np.asarray(loss4), np.asarray(ref3), rtol=1e-4, atol=1e-5), (loss4, ref3)

    print("KERNEL_OK")
</pallas_src>

<mosaic_0001>
module attributes {stable_mosaic.version = 11 : i64} {
  func.func @_ce_lengths_kernel(%arg0: i32, %arg1: i32, %arg2: i32, %arg3: memref<2xi32, #tpu.memory_space<smem>>, %arg4: memref<1x16x8xf32, #tpu.memory_space<vmem>>, %arg5: memref<1x1x8xi32, #tpu.memory_space<vmem>>, %arg6: memref<1x1x8xf32, #tpu.memory_space<vmem>>) attributes {dimension_semantics = [#tpu.dimension_semantics<parallel>, #tpu.dimension_semantics<parallel>, #tpu.dimension_semantics<arbitrary>], iteration_bounds = array<i64: 2, 1, 1>, scalar_prefetch = 1 : i64, scratch_operands = 0 : i64, tpu.core_type = #tpu.core_type<tc>, window_params = [{transform_indices = @transform_0, window_bounds = array<i64: 1, 16, 8>}, {transform_indices = @transform_1, window_bounds = array<i64: 1, 1, 8>}, {transform_indices = @transform_2, window_bounds = array<i64: 1, 1, 8>}]} {
    %c0_i32 = arith.constant 0 : i32
    %0 = arith.cmpi eq, %arg2, %c0_i32 : i32
    %1 = arith.extui %0 : i1 to i32
    %c0_i32_0 = arith.constant 0 : i32
    %2 = arith.cmpi ne, %1, %c0_i32_0 : i32
    scf.if %2 {
      %cst_19 = arith.constant 0.000000e+00 : f32
      %42 = vector.broadcast %cst_19 : f32 to vector<1x1x8xf32>
      %c0_20 = arith.constant 0 : index
      %c0_21 = arith.constant 0 : index
      %c0_22 = arith.constant 0 : index
      %43 = vector.load %arg6[%c0_20, %c0_21, %c0_22] : memref<1x1x8xf32, #tpu.memory_space<vmem>>, vector<1x1x8xf32>
      tpu.vector_store %arg6[%c0_20, %c0_21, %c0_22], %42 {strides = array<i32>} : memref<1x1x8xf32, #tpu.memory_space<vmem>>, vector<1x1x8xf32>,
    } else {
    }
    %c0 = arith.constant 0 : index
    %c0_1 = arith.constant 0 : index
    %c0_2 = arith.constant 0 : index
    %3 = vector.load %arg4[%c0, %c0_1, %c0_2] : memref<1x16x8xf32, #tpu.memory_space<vmem>>, vector<1x16x8xf32>
    %c0_3 = arith.constant 0 : index
    %c0_4 = arith.constant 0 : index
    %c0_5 = arith.constant 0 : index
    %4 = vector.load %arg5[%c0_3, %c0_4, %c0_5] : memref<1x1x8xi32, #tpu.memory_space<vmem>>, vector<1x1x8xi32>
    %cst = arith.constant dense<0xFF800000> : vector<1x8xf32>
    %5 = vector.multi_reduction <maximumf>, %3, %cst [1] : vector<1x16x8xf32> to vector<1x8xf32>
    %6 = vector.shape_cast %5 : vector<1x8xf32> to vector<1x1x8xf32>
    %7 = vector.broadcast %6 : vector<1x1x8xf32> to vector<1x16x8xf32>
    %8 = arith.subf %3, %7 : vector<1x16x8xf32>
    %9 = math.exp %8 : vector<1x16x8xf32>
    %cst_6 = arith.constant dense<0.000000e+00> : vector<1x8xf32>
    %10 = vector.multi_reduction <add>, %9, %cst_6 [1] : vector<1x16x8xf32> to vector<1x8xf32>
    %11 = vector.shape_cast %10 : vector<1x8xf32> to vector<1x1x8xf32>
    %12 = math.log %11 : vector<1x1x8xf32>
    %13 = tpu.iota {dimensions = array<i32: 1>} : vector<1x16x8xi32>
    %14 = vector.broadcast %4 : vector<1x1x8xi32> to vector<1x16x8xi32>
    %15 = arith.cmpi eq, %13, %14 : vector<1x16x8xi32>
    %cst_7 = arith.constant 0.000000e+00 : f32
    %16 = vector.broadcast %cst_7 : f32 to vector<1x16x8xf32>
    %17 = arith.select %15, %8, %16 : vector<1x16x8xi1>, vector<1x16x8xf32>
    %cst_8 = arith.constant dense<0.000000e+00> : vector<1x8xf32>
    %18 = vector.multi_reduction <add>, %17, %cst_8 [1] : vector<1x16x8xf32> to vector<1x8xf32>
    %19 = vector.shape_cast %18 : vector<1x8xf32> to vector<1x1x8xf32>
    %20 = arith.subf %12, %19 : vector<1x1x8xf32>
    %c0_i32_9 = arith.constant 0 : i32
    %21 = arith.muli %arg1, %c0_i32_9 : i32
    %22 = arith.addi %21, %arg2 : i32
    %c8_i32 = arith.constant 8 : i32
    %23 = arith.muli %22, %c8_i32 : i32
    %24 = tpu.iota {dimensions = array<i32: 2>} : vector<1x1x8xi32>
    %25 = vector.broadcast %23 : i32 to vector<1x1x8xi32>
    %26 = arith.addi %25, %24 : vector<1x1x8xi32>
    %27 = arith.index_cast %arg0 : i32 to index
    %28 = memref.load %arg3[%27] : memref<2xi32, #tpu.memory_space<smem>>
    %c1_i32 = arith.constant 1 : i32
    %29 = arith.muli %28, %c1_i32 : i32
    %c8_i32_10 = arith.constant 8 : i32
    %30 = arith.minsi %29, %c8_i32_10 : i32
    %c8_i32_11 = arith.constant 8 : i32
    %31 = arith.muli %arg1, %c8_i32_11 : i32
    %32 = vector.broadcast %31 : i32 to vector<1x1x8xi32>
    %33 = arith.cmpi sge, %26, %32 : vector<1x1x8xi32>
    %34 = vector.broadcast %30 : i32 to vector<1x1x8xi32>
    %35 = arith.cmpi slt, %26, %34 : vector<1x1x8xi32>
    %36 = arith.andi %33, %35 : vector<1x1x8xi1>
    %c0_12 = arith.constant 0 : index
    %c0_13 = arith.constant 0 : index
    %c0_14 = arith.constant 0 : index
    %37 = vector.load %arg6[%c0_12, %c0_13, %c0_14] : memref<1x1x8xf32, #tpu.memory_space<vmem>>, vector<1x1x8xf32>
    %cst_15 = arith.constant 0.000000e+00 : f32
    %38 = vector.broadcast %cst_15 : f32 to vector<1x1x8xf32>
    %39 = arith.select %36, %20, %38 : vector<1x1x8xi1>, vector<1x1x8xf32>
    %40 = arith.addf %37, %39 : vector<1x1x8xf32>
    %c0_16 = arith.constant 0 : index
    %c0_17 = arith.constant 0 : index
    %c0_18 = arith.constant 0 : index
    %41 = vector.load %arg6[%c0_16, %c0_17, %c0_18] : memref<1x1x8xf32, #tpu.memory_space<vmem>>, vector<1x1x8xf32>
    tpu.vector_store %arg6[%c0_16, %c0_17, %c0_18], %40 {strides = array<i32>} : memref<1x1x8xf32, #tpu.memory_space<vmem>>, vector<1x1x8xf32>,
    return
  }
  func.func @transform_0(%arg0: i32, %arg1: i32, %arg2: i32, %arg3: memref<2xi32, #tpu.memory_space<smem>>) -> (i32, i32, i32) {
    %c0_i32 = arith.constant 0 : i32
    %0 = arith.muli %arg1, %c0_i32 : i32
    %1 = arith.addi %0, %arg2 : i32
    %c0_i32_0 = arith.constant 0 : i32
    %c0_i32_1 = arith.constant 0 : i32
    return %arg0, %c0_i32_0, %1 : i32, i32, i32
  }
  func.func @transform_1(%arg0: i32, %arg1: i32, %arg2: i32, %arg3: memref<2xi32, #tpu.memory_space<smem>>) -> (i32, i32, i32) {
    %c0_i32 = arith.constant 0 : i32
    %0 = arith.muli %arg1, %c0_i32 : i32
    %1 = arith.addi %0, %arg2 : i32
    %c0_i32_0 = arith.constant 0 : i32
    %c0_i32_1 = arith.constant 0 : i32
    return %arg0, %c0_i32_0, %1 : i32, i32, i32
  }
  func.func @transform_2(%arg0: i32, %arg1: i32, %arg2: i32, %arg3: memref<2xi32, #tpu.memory_space<smem>>) -> (i32, i32, i32) {
    %c1_i32 = arith.constant 1 : i32
    %0 = arith.muli %arg0, %c1_i32 : i32
    %1 = arith.addi %0, %arg1 : i32
    %c0_i32 = arith.constant 0 : i32
    %c0_i32_0 = arith.constant 0 : i32
    %c0_i32_1 = arith.constant 0 : i32
    return %1, %c0_i32, %c0_i32_0 : i32, i32, i32
  }
}

</mosaic_0001>

<llo_original>
// kernel: tpu_custom_call.1
$region0: #{tpu_custom_call.1}
  #allocation0 [shape = 'u32[]', space=smem, size = 0x4, offset = 0x4, fixed_abs, tag = 'smem constant byte address 0x4 - core index']
  #allocation1 [shape = 'u32[144,128]{1,0:T(1,128)}', space=vmem, size = 0x12000, scoped, tag = 'internal scratch']
  #allocation2 [shape = 's32[1]{0}', space=sflag, size = 0x4, scoped, tag = 'scoped memory for tpu_custom_call.1']
  #allocation3 [shape = 'u8[512]{0}', space=smem, size = 0x200, scoped, tag = 'prefetched SMEM operand 0']
  %s0 = inlined_call_operand.vmem [shape: s32[2], index: 0, kind: input, shape index: {}]
  %s1 = inlined_call_operand.vmem [shape: f32[2,16,8], index: 1, kind: input, shape index: {}]
  %s2 = inlined_call_operand.vmem [shape: s32[2,1,8], index: 2, kind: input, shape index: {}]
  %s3 = inlined_call_operand.hbm [shape: f32[2,1,8], index: 3, kind: output, shape index: {}]
  %s4 = sld [smem:[#allocation0]]
  $region45: #{tpu_custom_call.1} parent=0
    _
  %s6 = ssub.s32 1, %s4
  %s7 = scalar_select 0, %s6, %s4
  %s8 = sshll.u32 %s0, 4
  %s9 = int_to_ptr.vmem [resolvable:$true] %s8
  %11 = dma.vmem_to_smem %s9, 16, [#allocation3], [#allocation2]
  %12 = dma.done [#allocation2], 16
  %13 = sfence
  $region1: #{tpu_custom_call.1} parent=0
    #allocation4 [shape = 'u8[1024]{0}', space=vmem, size = 0x400, scoped, tag = 'output window, operand 0']
    #allocation5 [shape = 's32[2]{0}', space=sflag, size = 0x8, scoped, tag = 'scoped memory for tpu_custom_call.1']
    %14 = vsyncpa [#allocation5], 0
    %s15 = scalar_lea.sflag [#allocation5], 1
    %16 = vsyncpa %s15, 0
    loop: start=0, step=1, limit=4
    $region2: #{tpu_custom_call.1} parent=1 // loop_pre_header
      _
    $region3: #{tpu_custom_call.1} parent=1 // loop_header
      %s18 = sphi 0, %s22
      %p19 = scmp.ge.s32.totalorder %s18, 4
      %s25 = sphi 0, %s44
      %s26 = sphi 0, %s40
      %s27 = sphi 0, %s36
      %s28 = sphi 0, %s25
      %s29 = sphi 0, %s26
      %s30 = sphi 0, %s27
      %s31 = sphi 0, %s28
      %s32 = sphi 0, %s29
      %s33 = sphi 0, %s30
      %s49 = sphi 0, %s51
      %s52 = sphi 0, %s49
      %s53 = sphi 0, %s52
      %s69 = sphi 0, %s53
      %s77 = sphi 0, %s79
      %s80 = sphi 0, %s77
      %s81 = sphi 0, %s80
      %s97 = sphi 0, %s81
      %s105 = sphi 0, %s107
      %s108 = sphi 0, %s105
      %s109 = sphi 0, %s108
      %s125 = sphi 0, %s109
    $region4: #{tpu_custom_call.1} parent=1 // loop_header_branch
      %21 = sbr.rel (%p19) target = $region8
    $region5: #{tpu_custom_call.1} parent=1 // loop_body
      %s23 = ssub.s32 %s18, 1
      %s24 = ssub.s32 %s18, 2
      %s34 = sadd.s32 1, %s27
      %p35 = scmp.ge.s32.totalorder %s34, 1
      %s36 = scalar_select %p35, 0, %s34
      %s37 = sadd.s32 1, %s26
      %s38 = scalar_select %p35, %s37, %s26
      %p39 = scmp.ge.s32.totalorder %s38, 1
      %s40 = scalar_select %p39, 0, %s38
      %s41 = sadd.s32 1, %s25
      %s42 = scalar_select %p39, %s41, %s25
      %p43 = scmp.ge.s32.totalorder %s42, 2
      %s44 = scalar_select %p43, 0, %s42
      %s45 = ssub.s32 %s25, %s44
      %s46 = ssub.s32 %s27, %s36
      %s47 = sor.u32 %s45, %s46
      %p48 = scmp.eq.s32.totalorder %s47, 0
      %s50 = sadd.s32 %s49, 1
      %s51 = scalar_select %p48, %s49, %s50
      %p54 = pneg %p48
      %p55 = scmp.eq.s32.totalorder %s18, 1
      %p56 = por %p54, %p55
      %p57 = scmp.ne.s32.totalorder %s49, %s52
      %p58 = scmp.eq.s32.totalorder %s18, 0
      %p59 = por %p57, %p58
      %p60 = scmp.ne.s32.totalorder %s49, %s52
      %p61 = scmp.eq.s32.totalorder %s23, 1
      %p62 = por %p60, %p61
      %p63 = scmp.ne.s32.totalorder %s52, %s53
      %p64 = scmp.eq.s32.totalorder %s23, 0
      %p65 = por %p63, %p64
      %p66 = scmp.ne.s32.totalorder %s52, %s53
      %p67 = scmp.eq.s32.totalorder %s24, 1
      %p68 = por %p66, %p67
      %p70 = scmp.ne.s32.totalorder %s53, %s69
      %p71 = scmp.eq.s32.totalorder %s24, 0
      %p72 = por %p70, %p71
      %s73 = ssub.s32 %s25, %s44
      %s74 = ssub.s32 %s27, %s36
      %s75 = sor.u32 %s73, %s74
      %p76 = scmp.eq.s32.totalorder %s75, 0
      %s78 = sadd.s32 %s77, 1
      %s79 = scalar_select %p76, %s77, %s78
      %p82 = pneg %p76
      %p83 = scmp.eq.s32.totalorder %s18, 1
      %p84 = por %p82, %p83
      %p85 = scmp.ne.s32.totalorder %s77, %s80
      %p86 = scmp.eq.s32.totalorder %s18, 0
      %p87 = por %p85, %p86
      %p88 = scmp.ne.s32.totalorder %s77, %s80
      %p89 = scmp.eq.s32.totalorder %s23, 1
      %p90 = por %p88, %p89
      %p91 = scmp.ne.s32.totalorder %s80, %s81
      %p92 = scmp.eq.s32.totalorder %s23, 0
      %p93 = por %p91, %p92
      %p94 = scmp.ne.s32.totalorder %s80, %s81
      %p95 = scmp.eq.s32.totalorder %s24, 1
      %p96 = por %p94, %p95
      %p98 = scmp.ne.s32.totalorder %s81, %s97
      %p99 = scmp.eq.s32.totalorder %s24, 0
      %p100 = por %p98, %p99
      %s101 = sadd.s32 %s25, %s26
      %s102 = sadd.s32 %s44, %s40
      %s103 = ssub.s32 %s101, %s102
      %p104 = scmp.eq.s32.totalorder %s103, 0
      %s106 = sadd.s32 %s105, 1
      %s107 = scalar_select %p104, %s105, %s106
      %p110 = pneg %p104
      %p111 = scmp.eq.s32.totalorder %s18, 1
      %p112 = por %p110, %p111
      %p113 = scmp.ne.s32.totalorder %s105, %s108
      %p114 = scmp.eq.s32.totalorder %s18, 0
      %p115 = por %p113, %p114
      %p116 = scmp.ne.s32.totalorder %s105, %s108
      %p117 = scmp.eq.s32.totalorder %s23, 1
      %p118 = por %p116, %p117
      %p119 = scmp.ne.s32.totalorder %s108, %s109
      %p120 = scmp.eq.s32.totalorder %s23, 0
      %p121 = por %p119, %p120
      %p122 = scmp.ne.s32.totalorder %s108, %s109
      %p123 = scmp.eq.s32.totalorder %s24, 1
      %p124 = por %p122, %p123
      %p126 = scmp.ne.s32.totalorder %s109, %s125
      %p127 = scmp.eq.s32.totalorder %s24, 0
      %p128 = por %p126, %p127
      %p129 = scmp.le.s32.totalorder 1, %s18
      %p130 = scmp.lt.s32.totalorder %s18, 3
      %p131 = pnand %p129, %p130
      %p132 = pneg %p131
      // Predicated region
      $region9: #{tpu_custom_call.1} parent=5 // pred_check
        _
      $region10: #{tpu_custom_call.1} parent=5 // pred_check_branch
        %134 = sbr.rel (%p131) target = $region12
      $region11: #{tpu_custom_call.1} parent=5 // pred_region
        %s135 = ssub.s32 %s18, 1
      $region12: #{tpu_custom_call.1} parent=5 // pred_fallthru
        _
      %p136 = scmp.lt.s32.totalorder %s18, 2
      // Predicated region
      $region13: #{tpu_custom_call.1} parent=5 // pred_check
        %p137 = pneg %p136
      $region14: #{tpu_custom_call.1} parent=5 // pred_check_branch
        %139 = sbr.rel (%p137) target = $region16
      $region15: #{tpu_custom_call.1} parent=5 // pred_region
        // Predicated region
        $region17: #{tpu_custom_call.1} parent=15 // pred_check
          %p140 = pneg %p59
        $region18: #{tpu_custom_call.1} parent=15 // pred_check_branch
          %142 = sbr.rel (%p140) target = $region20
        $region19: #{tpu_custom_call.1} parent=15 // pred_region
          %p143 = scmp.lt.s32.totalorder %s25, 1
          %s144 = scalar_select %p143, %s25, 1
          %p145 = scmp.lt.s32.totalorder %s27, 0
          %s146 = scalar_select %p145, %s27, 0
          %s147 = smul.addr %s144, 2
          %s148 = sadd.s32 %s146, %s147
          %s149 = smul.addr %s148, 8
          %s150 = scalar_lea.vmem %s1, %s149
        $region20: #{tpu_custom_call.1} parent=15 // pred_fallthru
          _
        // Predicated region
        $region21: #{tpu_custom_call.1} parent=15 // pred_check
          %p151 = pneg %p87
        $region22: #{tpu_custom_call.1} parent=15 // pred_check_branch
          %153 = sbr.rel (%p151) target = $region24
        $region23: #{tpu_custom_call.1} parent=15 // pred_region
          %p154 = scmp.lt.s32.totalorder %s25, 1
          %s155 = scalar_select %p154, %s25, 1
          %p156 = scmp.lt.s32.totalorder %s27, 0
          %s157 = scalar_select %p156, %s27, 0
          %s158 = sadd.s32 %s157, %s155
          %s159 = scalar_lea.vmem %s2, %s158
        $region24: #{tpu_custom_call.1} parent=15 // pred_fallthru
          _
      $region16: #{tpu_custom_call.1} parent=5 // pred_fallthru
        _
      %p160 = scmp.le.s32.totalorder 1, %s18
      %p161 = scmp.lt.s32.totalorder %s18, 3
      %p162 = pnand %p160, %p161
      %p163 = pneg %p162
      // Predicated region
      $region25: #{tpu_custom_call.1} parent=5 // pred_check
        _
      $region26: #{tpu_custom_call.1} parent=5 // pred_check_branch
        %165 = sbr.rel (%p162) target = $region28
      $region27: #{tpu_custom_call.1} parent=5 // pred_region
        %s166 = ssub.s32 %s18, 1
        %p167 = scmp.lt.s32.totalorder %s28, 1
        %s168 = scalar_select %p167, %s28, 1
        %p169 = scmp.lt.s32.totalorder %s30, 0
        %s170 = scalar_select %p169, %s30, 0
        %s171 = smul.addr %s168, 2
        %s172 = sadd.s32 %s170, %s171
        %s173 = smul.addr %s172, 8
        %s174 = scalar_lea.vmem %s1, %s173
        %p175 = pneg %p65
        %p176 = pneg %p62
        %p177 = scmp.lt.s32.totalorder %s28, 1
        %s178 = scalar_select %p177, %s28, 1
        %p179 = scmp.lt.s32.totalorder %s30, 0
        %s180 = scalar_select %p179, %s30, 0
        %s181 = sadd.s32 %s180, %s178
        %s182 = scalar_lea.vmem %s2, %s181
        %p183 = pneg %p93
        %p184 = pneg %p90
        %p185 = pneg %p121
        %p186 = pneg %p118
        %s187 = sand.u32 %s108, 1
        %s188 = scalar_lea.sflag [#allocation5], %s187
        %s189 = sand.u32 %s108, 1
        %s190 = scalar_lea.vmem [#allocation4], %s189
        %p191 = scmp.lt.s32.totalorder %s28, 1
        %s192 = scalar_select %p191, %s28, 1
        %p193 = scmp.lt.s32.totalorder %s30, 0
        %s194 = scalar_select %p193, %s30, 0
        %s195 = smul.addr %s192, 2
        %s196 = sadd.s32 %s194, %s195
        %s197 = smul.addr %s196, 8
        %s198 = scalar_lea.vmem %s1, %s197
        %p199 = scmp.lt.s32.totalorder %s28, 1
        %s200 = scalar_select %p199, %s28, 1
        %p201 = scmp.lt.s32.totalorder %s30, 0
        %s202 = scalar_select %p201, %s30, 0
        %s203 = sadd.s32 %s202, %s200
        %s204 = scalar_lea.vmem %s2, %s203
        %s205 = sadd.s32 %s28, %s29
        %p206 = scmp.eq.s32.totalorder %s30, 0
        // Predicated region
        $region29: #{tpu_custom_call.1} parent=27 // pred_check
          %p207 = pneg %p206
        $region30: #{tpu_custom_call.1} parent=27 // pred_check_branch
          %209 = sbr.rel (%p207) target = $region32
        $region31: #{tpu_custom_call.1} parent=27 // pred_region
          %vm210 = vcmask 57344
          %211 = vst.msk [vmem:[%s190] sm:$0x1] %vm210, 0.0
        $region32: #{tpu_custom_call.1} parent=27 // pred_fallthru
          _
        %v212 = vld [vmem:[%s198] sm:$0xff]
        %v213 = vld [vmem:[%s198 + $0x8] sm:$0xff]
        %v214 = vld [vmem:[%s204] sm:$0x1]
        %vm215 = vcmask 64512
        %v216 = vsel %vm215, %v212, -inf
        %v217 = vsel %vm215, %v213, -inf
        %v218 = vmax.f32 %v216, %v217
        %v219 = vrot.slane %v218, 4
        %v220 = vmax.f32 %v218, %v219
        %v221 = vrot.slane %v220, 2
        %v222 = vmax.f32 %v220, %v221
        %v223 = vrot.slane %v222, 1
        %v224 = vmax.f32 %v222, %v223
        %v225 = vsub.f32 %v212, %v224
        %v226 = vsub.f32 %v213, %v224
        %v227 = vmul.f32 %v225, 1.442695
        %v228 = vpow.pop %v227
        %v229 = vmul.f32 %v226, 1.442695
        %v230 = vpow.pop %v229
        %v231 = vsel %vm215, %v228, 0.0
        %v232 = vsel %vm215, %v230, 0.0
        %v233 = vadd.f32 %v231, %v232
        %v234 = vrot.slane %v233, 4
        %v235 = vadd.f32 %v233, %v234
        %v236 = vrot.slane %v235, 2
        %v237 = vadd.f32 %v235, %v236
        %v238 = vrot.slane %v237, 1
        %v239 = vadd.f32 %v237, %v238
        %v240 = vlog2.pop %v239
        %v241 = vmul.f32 %v240, 0.6931472
        %v242 = vlaneseq
        %v243 = vshrl.u32 %v242, 7
        %v244 = vadd.s32 %v243, 8
        %v245 = vlaneseq
        %v246 = vshrl.u32 %v245, 7
        %v247 = vsub.s32 0, %v246
        %v248 = vrot.slane %v214, %v247
        %vm249 = vcmp.eq.s32.totalorder %v243, %v248
        %vm250 = vcmp.eq.s32.totalorder %v244, %v248
        %v251 = vsel %vm249, %v225, 0.0
        %v252 = vsel %vm250, %v226, 0.0
        %v253 = vsel %vm215, %v251, 0.0
        %v254 = vsel %vm215, %v252, 0.0
        %v255 = vadd.f32 %v253, %v254
        %v256 = vrot.slane %v255, 4
        %v257 = vadd.f32 %v255, %v256
        %v258 = vrot.slane %v257, 2
        %v259 = vadd.f32 %v257, %v258
        %v260 = vrot.slane %v259, 1
        %v261 = vadd.f32 %v259, %v260
        %v262 = vsub.f32 %v241, %v261
        %s263 = smul.u32 %s30, 8
        %v264 = vlaneseq
        %v265 = vand.u32 %v264, 127
        %v266 = vstv %s263
        %v267 = vadd.s32 %v266, %v265
        %s268 = sld [smem:[#allocation3 + %s28]]
        %p269 = scmp.lt.s32.totalorder %s268, 8
        %s270 = scalar_select %p269, %s268, 8
        %s271 = smul.u32 %s29, 8
        %v272 = vstv %s271
        %vm273 = vcmp.ge.s32.totalorder %v267, %v272
        %v274 = vstv %s270
        %vm275 = vcmp.lt.s32.totalorder %v267, %v274
        %vm276 = vmand %vm273, %vm275
        %v277 = vld [vmem:[%s190] sm:$0x1]
        %v278 = vsel %vm276, %v262, 0.0
        %v279 = vadd.f32 %v277, %v278
        %vm280 = vcmask 57344
        %281 = vst.msk [vmem:[%s190] sm:$0x1] %vm280, %v279
        %s282 = sand.u32 %s108, 1
        %s283 = scalar_lea.sflag [#allocation5], %s282
        %s284 = sand.u32 %s108, 1
        %s285 = scalar_lea.vmem [#allocation4], %s284
        // Predicated region
        $region33: #{tpu_custom_call.1} parent=27 // pred_check
          %p286 = pneg %p118
        $region34: #{tpu_custom_call.1} parent=27 // pred_check_branch
          %288 = sbr.rel (%p286) target = $region36
        $region35: #{tpu_custom_call.1} parent=27 // pred_region
          %s289 = sadd.s32 %s28, %s29
          %s291 = ssub.s32 16, 16
          %292 = vsyncadd %s283, %s291
          %s293 = smul.addr %s289, 16
          %s294 = scalar_lea.hbm %s3, %s293
          %s296 = sshll.u32 %s285, 4
          %s297 = int_to_ptr.vmem [resolvable:$true] %s296
          %299 = dma.vmem_to_hbm [thread:$0]  %s297, 16, %s294, %s283
        $region36: #{tpu_custom_call.1} parent=27 // pred_fallthru
          _
      $region28: #{tpu_custom_call.1} parent=5 // pred_fallthru
        _
      %p300 = scmp.le.s32.totalorder 2, %s18
      // Predicated region
      $region37: #{tpu_custom_call.1} parent=5 // pred_check
        %p301 = pneg %p300
      $region38: #{tpu_custom_call.1} parent=5 // pred_check_branch
        %303 = sbr.rel (%p301) target = $region40
      $region39: #{tpu_custom_call.1} parent=5 // pred_region
        %s304 = ssub.s32 %s18, 2
        // Predicated region
        $region41: #{tpu_custom_call.1} parent=39 // pred_check
          %p305 = pneg %p124
        $region42: #{tpu_custom_call.1} parent=39 // pred_check_branch
          %307 = sbr.rel (%p305) target = $region44
        $region43: #{tpu_custom_call.1} parent=39 // pred_region
          %s308 = sand.u32 %s109, 1
          %s309 = scalar_lea.sflag [#allocation5], %s308
          %s310 = sand.u32 %s109, 1
          %s311 = scalar_lea.vmem [#allocation4], %s310
          %312 = dma.done %s309, 16
        $region44: #{tpu_custom_call.1} parent=39 // pred_fallthru
          _
      $region40: #{tpu_custom_call.1} parent=5 // pred_fallthru
        _
    $region6: #{tpu_custom_call.1} parent=1 // loop_footer
      %s22 = sadd.s32 1, %s18
    $region7: #{tpu_custom_call.1} parent=1 // loop_footer_branch
      %17 = sbr.rel target = $region3
    $region8: #{tpu_custom_call.1} parent=1 // loop_exit
      _
    %313 = vsyncpa [#allocation5], 1
    %s314 = scalar_lea.sflag [#allocation5], 1
    %315 = vsyncpa %s314, 1

</llo_original>
